<compile_context>
chip_gen: v6e
topology: v6e:2x2x1
jax: 0.10.0
libtpu: 0.0.40
codegen_flags: <defaults>
</compile_context>

<pallas_src>
import functools

import jax
import jax.numpy as jnp
from jax import lax
from jax.experimental import pallas as pl
from jax.experimental.pallas import tpu as pltpu


def _path_loss_kernel(pred_ref, tgt_ref, se_ref, out_ref, *,
                      B, H, W, TB, ragged, binary_targets,
                      path_w, conn_w, smooth_w, dist_w):
    HW = H * W

    # Upcast after the (possibly low-precision) VMEM load.
    p = pred_ref[...].astype(jnp.float32)      # (TB, HW)
    t = tgt_ref[...].astype(jnp.float32)       # (TB, HW)
    se = se_ref[...]                           # (TB, 2) int32 flat [start, end]

    if ragged:
        i = pl.program_id(0)
        row = lax.broadcasted_iota(jnp.int32, (TB, 1), 0) + i * TB
        valid = row < B                        # (TB, 1) bool
        # Sanitize the garbage rows of the ragged last block BEFORE any log so
        # NaN/Inf can never be produced there.  Constant rows also make the
        # smoothness gradients of those rows exactly zero (no extra mask).
        p = jnp.where(valid, p, 0.5)
        t = jnp.where(valid, t, 0.0)

    # Compile-time fused coefficients (the per-term means are folded in here).
    c_bce = path_w / (B * H * W)
    c_gx = smooth_w / (B * H * (W - 1)) if W > 1 else 0.0
    c_gy = smooth_w / (B * (H - 1) * W) if H > 1 else 0.0
    c_dist = dist_w / B
    c_conn = conn_w / B

    # --- BCE (torch clamps each log at -100) ---
    if binary_targets:
        # One EUP log instead of two; exact for targets in {0, 1}.
        bce = -jnp.maximum(jnp.log(jnp.where(t > 0.5, p, 1.0 - p)), -100.0)
    else:
        logp = jnp.maximum(jnp.log(p), -100.0)
        log1mp = jnp.maximum(jnp.log(1.0 - p), -100.0)
        bce = -(log1mp + t * (logp - log1mp))

    # Lane index within the flattened H*W image, hoisted to one (1, HW) row.
    k = lax.broadcasted_iota(jnp.int32, (1, HW), 1)

    # --- connectivity: one-hot hit masks against flat start/end indices.
    #     sum_b [(1 - p_start) + (1 - p_end)] = 2*B - sum(p * hits);
    #     the constant 2*conn_w is added back in the wrapper. ---
    hits = ((k == se[:, 0:1]).astype(jnp.float32)
            + (k == se[:, 1:2]).astype(jnp.float32))

    # --- fused per-pixel term: BCE + distance + connectivity ---
    val = c_bce * bce + p * (c_dist - c_conn * hits)
    if ragged:
        val = jnp.where(valid, val, 0.0)
    partial = jnp.sum(val)

    # --- smoothness |grad_x|, |grad_y| via lane-offset slices ---
    if W > 1:
        dx = p[:, 1:] - p[:, :-1]                        # (TB, HW-1)
        # Per-lane coefficient row (1, HW-1): weight 0 on column-0 wraps.
        wx = jnp.where((k % W) != 0, c_gx, 0.0)[:, 1:]
        partial = partial + jnp.sum(wx * jnp.abs(dx))
    if H > 1:
        dy = p[:, W:] - p[:, :-W]                        # (TB, HW-W), no mask
        partial = partial + c_gy * jnp.sum(jnp.abs(dy))

    # Lane-dense partial-sum tile for this block.
    out_ref[...] = jnp.full((1, 8, 128), partial, dtype=jnp.float32)


def _pick_batch_tile(B, HW, itemsize):
    """Pick a batch tile TB (multiple of 8 when tiling) targeting ~512 KiB."""
    target_bytes = 512 * 1024
    cap = max(8, ((target_bytes // max(1, HW * itemsize)) // 8) * 8)
    if B >= 16:
        # Guarantee >= 2 grid steps so the "parallel" axis can use both
        # TensorCores on v7x and DMA overlaps with compute.
        cap = min(cap, max(8, (B // 2) // 8 * 8))
    if B <= cap:
        return B                      # whole (small) batch in one block
    # Prefer a multiple-of-8 tile that divides B -> no ragged last block.
    for cand in range(cap, 7, -8):
        if B % cand == 0:
            return cand
    return cap  # ragged last block, sanitized in-kernel (no jnp.pad of HBM)


def path_loss(predicted_path, target_path, start_pos, end_pos,
              path_weight=1.0, connectivity_weight=0.5,
              smoothness_weight=0.3, distance_weight=0.2,
              assume_binary_targets=False):
    """predicted_path/target_path: [B, 1, H, W]; start_pos/end_pos: [B, 2]."""
    B, C, H, W = predicted_path.shape
    assert C == 1
    HW = H * W

    # Keep the native dtype (bf16 stays bf16 -> half the HBM bytes); the
    # kernel upcasts to f32 right after the VMEM load.
    pred = predicted_path.reshape(B, HW)
    tgt = target_path.reshape(B, HW)

    # Flat indices sy*W + sx / ey*W + ex (PyTorch .int() truncation), packed
    # into a single (B, 2) int32 input.
    sp = start_pos.astype(jnp.int32)
    ep = end_pos.astype(jnp.int32)
    se = jnp.stack([sp[:, 1] * W + sp[:, 0], ep[:, 1] * W + ep[:, 0]], axis=1)

    itemsize = jnp.dtype(pred.dtype).itemsize
    TB = _pick_batch_tile(B, HW, itemsize)
    n_blocks = pl.cdiv(B, TB)
    ragged = (B % TB) != 0

    # TODO(synk): if HW % 128 != 0, optionally pad the flat axis to a 128
    # multiple with zero-weight pixels for fully unmasked vregs.

    kernel = functools.partial(
        _path_loss_kernel, B=B, H=H, W=W, TB=TB, ragged=ragged,
        binary_targets=bool(assume_binary_targets),
        path_w=float(path_weight), conn_w=float(connectivity_weight),
        smooth_w=float(smoothness_weight), dist_w=float(distance_weight))

    partials = pl.pallas_call(
        kernel,
        out_shape=jax.ShapeDtypeStruct((n_blocks, 8, 128), jnp.float32),
        grid_spec=pltpu.PrefetchScalarGridSpec(
            num_scalar_prefetch=0,
            grid=(n_blocks,),
            in_specs=[
                pl.BlockSpec((TB, HW), lambda i: (i, 0)),
                pl.BlockSpec((TB, HW), lambda i: (i, 0)),
                pl.BlockSpec((TB, 2), lambda i: (i, 0)),
            ],
            out_specs=pl.BlockSpec((1, 8, 128), lambda i: (i, 0, 0)),
        ),
        compiler_params=pltpu.CompilerParams(
            dimension_semantics=("parallel",),
            vmem_limit_bytes=32 * 1024 * 1024),
    )(pred, tgt, se)

    # Tiny final combine: per-block partial sums + connectivity constant.
    return jnp.sum(partials[:, 0, 0]) + 2.0 * float(connectivity_weight)


def path_loss_ref(pred, tgt, start_pos, end_pos,
                  path_weight=1.0, connectivity_weight=0.5,
                  smoothness_weight=0.3, distance_weight=0.2):
    """Pure-JAX reference mirroring the PyTorch module."""
    p = pred.astype(jnp.float32)
    t = tgt.astype(jnp.float32)
    bce = jnp.mean(-(t * jnp.maximum(jnp.log(p), -100.0)
                     + (1.0 - t) * jnp.maximum(jnp.log(1.0 - p), -100.0)))
    B = p.shape[0]
    sp = start_pos.astype(jnp.int32)
    ep = end_pos.astype(jnp.int32)
    start_prob = p[jnp.arange(B), 0, sp[:, 1], sp[:, 0]]
    end_prob = p[jnp.arange(B), 0, ep[:, 1], ep[:, 0]]
    conn = jnp.sum((1.0 - start_prob) + (1.0 - end_prob)) / B
    gx = jnp.mean(jnp.abs(p[:, :, :, 1:] - p[:, :, :, :-1]))
    gy = jnp.mean(jnp.abs(p[:, :, 1:, :] - p[:, :, :-1, :]))
    dist = jnp.mean(jnp.sum(p, axis=(2, 3)))
    return (path_weight * bce + connectivity_weight * conn
            + smoothness_weight * (gx + gy) + distance_weight * dist)


if __name__ == "__main__":
    key = jax.random.PRNGKey(0)
    k1, k2, k3, k4 = jax.random.split(key, 4)

    B, H, W = 2, 16, 16
    predicted_path = jax.nn.sigmoid(
        jax.random.normal(k1, (B, 1, H, W), dtype=jnp.float32))
    target_path = jax.random.bernoulli(k2, 0.3, (B, 1, H, W)).astype(jnp.float32)
    start_pos = jax.random.randint(k3, (B, 2), 0, W).astype(jnp.float32)
    end_pos = jax.random.randint(k4, (B, 2), 0, W).astype(jnp.float32)

    loss = path_loss(predicted_path, target_path, start_pos, end_pos)
    loss = jax.block_until_ready(loss)

    ref = path_loss_ref(predicted_path, target_path, start_pos, end_pos)
    assert jnp.allclose(loss, ref, rtol=1e-4, atol=1e-5), (loss, ref)

    # Binary-target fast path (one EUP log) — identical for {0,1} targets.
    loss_bin = path_loss(predicted_path, target_path, start_pos, end_pos,
                         assume_binary_targets=True)
    loss_bin = jax.block_until_ready(loss_bin)
    assert jnp.allclose(loss_bin, ref, rtol=1e-4, atol=1e-5), (loss_bin, ref)

    print("KERNEL_OK")
</pallas_src>

<mosaic_0001>
module attributes {stable_mosaic.version = 11 : i64} {
  func.func @_path_loss_kernel(%arg0: i32, %arg1: memref<2x256xf32, #tpu.memory_space<vmem>>, %arg2: memref<2x256xf32, #tpu.memory_space<vmem>>, %arg3: memref<2x2xi32, #tpu.memory_space<vmem>>, %arg4: memref<1x8x128xf32, #tpu.memory_space<vmem>>) attributes {dimension_semantics = [#tpu.dimension_semantics<parallel>], iteration_bounds = array<i64: 1>, scalar_prefetch = 0 : i64, scratch_operands = 0 : i64, tpu.core_type = #tpu.core_type<tc>, window_params = [{transform_indices = @transform_0, window_bounds = array<i64: 2, 256>}, {transform_indices = @transform_1, window_bounds = array<i64: 2, 256>}, {transform_indices = @transform_2, window_bounds = array<i64: 2, 2>}, {transform_indices = @transform_3, window_bounds = array<i64: 1, 8, 128>}]} {
    %c0 = arith.constant 0 : index
    %c0_0 = arith.constant 0 : index
    %0 = vector.load %arg1[%c0, %c0_0] : memref<2x256xf32, #tpu.memory_space<vmem>>, vector<2x256xf32>
    %c0_1 = arith.constant 0 : index
    %c0_2 = arith.constant 0 : index
    %1 = vector.load %arg2[%c0_1, %c0_2] : memref<2x256xf32, #tpu.memory_space<vmem>>, vector<2x256xf32>
    %c0_3 = arith.constant 0 : index
    %c0_4 = arith.constant 0 : index
    %2 = vector.load %arg3[%c0_3, %c0_4] : memref<2x2xi32, #tpu.memory_space<vmem>>, vector<2x2xi32>
    %3 = math.log %0 : vector<2x256xf32>
    %cst = arith.constant -1.000000e+02 : f32
    %4 = vector.broadcast %cst : f32 to vector<2x256xf32>
    %5 = arith.maximumf %3, %4 : vector<2x256xf32>
    %cst_5 = arith.constant 1.000000e+00 : f32
    %6 = vector.broadcast %cst_5 : f32 to vector<2x256xf32>
    %7 = arith.subf %6, %0 : vector<2x256xf32>
    %8 = math.log %7 : vector<2x256xf32>
    %cst_6 = arith.constant -1.000000e+02 : f32
    %9 = vector.broadcast %cst_6 : f32 to vector<2x256xf32>
    %10 = arith.maximumf %8, %9 : vector<2x256xf32>
    %11 = arith.subf %5, %10 : vector<2x256xf32>
    %12 = arith.mulf %1, %11 : vector<2x256xf32>
    %13 = arith.addf %10, %12 : vector<2x256xf32>
    %cst_7 = arith.constant 0.000000e+00 : f32
    %14 = vector.broadcast %cst_7 : f32 to vector<2x256xf32>
    %15 = arith.subf %14, %13 : vector<2x256xf32>
    %16 = tpu.iota {dimensions = array<i32: 1>} : vector<1x256xi32>
    %17 = vector.extract_strided_slice %2 {offsets = [0, 0], sizes = [2, 1], strides = [1, 1]} : vector<2x2xi32> to vector<2x1xi32>
    %18 = vector.broadcast %16 : vector<1x256xi32> to vector<2x256xi32>
    %19 = vector.broadcast %17 : vector<2x1xi32> to vector<2x256xi32>
    %20 = arith.cmpi eq, %18, %19 : vector<2x256xi32>
    %21 = arith.extui %20 : vector<2x256xi1> to vector<2x256xi32>
    %22 = arith.sitofp %21 : vector<2x256xi32> to vector<2x256xf32>
    %23 = vector.extract_strided_slice %2 {offsets = [0, 1], sizes = [2, 1], strides = [1, 1]} : vector<2x2xi32> to vector<2x1xi32>
    %24 = vector.broadcast %16 : vector<1x256xi32> to vector<2x256xi32>
    %25 = vector.broadcast %23 : vector<2x1xi32> to vector<2x256xi32>
    %26 = arith.cmpi eq, %24, %25 : vector<2x256xi32>
    %27 = arith.extui %26 : vector<2x256xi1> to vector<2x256xi32>
    %28 = arith.sitofp %27 : vector<2x256xi32> to vector<2x256xf32>
    %29 = arith.addf %22, %28 : vector<2x256xf32>
    %cst_8 = arith.constant 0.001953125 : f32
    %30 = vector.broadcast %cst_8 : f32 to vector<2x256xf32>
    %31 = arith.mulf %30, %15 : vector<2x256xf32>
    %cst_9 = arith.constant 2.500000e-01 : f32
    %32 = vector.broadcast %cst_9 : f32 to vector<2x256xf32>
    %33 = arith.mulf %32, %29 : vector<2x256xf32>
    %cst_10 = arith.constant 1.000000e-01 : f32
    %34 = vector.broadcast %cst_10 : f32 to vector<2x256xf32>
    %35 = arith.subf %34, %33 : vector<2x256xf32>
    %36 = arith.mulf %0, %35 : vector<2x256xf32>
    %37 = arith.addf %31, %36 : vector<2x256xf32>
    %38 = vector.shape_cast %37 : vector<2x256xf32> to vector<1x2x256xf32>
    %cst_11 = arith.constant dense<0.000000e+00> : vector<1xf32>
    %39 = vector.multi_reduction <add>, %38, %cst_11 [1, 2] : vector<1x2x256xf32> to vector<1xf32>
    %40 = vector.shape_cast %39 : vector<1xf32> to vector<1x1x1xf32>
    %41 = vector.extract %40[0, 0, 0] : f32 from vector<1x1x1xf32>
    %42 = vector.extract_strided_slice %0 {offsets = [0, 1], sizes = [2, 255], strides = [1, 1]} : vector<2x256xf32> to vector<2x255xf32>
    %43 = vector.extract_strided_slice %0 {offsets = [0, 0], sizes = [2, 255], strides = [1, 1]} : vector<2x256xf32> to vector<2x255xf32>
    %44 = arith.subf %42, %43 : vector<2x255xf32>
    %c16_i32 = arith.constant 16 : i32
    %c0_i32 = arith.constant 0 : i32
    %45 = arith.cmpi eq, %c16_i32, %c0_i32 : i32
    %c1_i32 = arith.constant 1 : i32
    %46 = arith.select %45, %c1_i32, %c16_i32 : i32
    %47 = vector.broadcast %46 : i32 to vector<1x256xi32>
    %48 = arith.remsi %16, %47 : vector<1x256xi32>
    %c0_i32_12 = arith.constant 0 : i32
    %49 = vector.broadcast %c0_i32_12 : i32 to vector<1x256xi32>
    %50 = arith.cmpi ne, %48, %49 : vector<1x256xi32>
    %c0_i32_13 = arith.constant 0 : i32
    %51 = vector.broadcast %c0_i32_13 : i32 to vector<1x256xi32>
    %52 = arith.cmpi slt, %48, %51 : vector<1x256xi32>
    %c0_i32_14 = arith.constant 0 : i32
    %53 = arith.cmpi slt, %46, %c0_i32_14 : i32
    %54 = vector.broadcast %53 : i1 to vector<1x256xi1>
    %55 = vector.broadcast %54 : vector<1x256xi1> to vector<1x256xi1>
    %56 = arith.xori %52, %55 : vector<1x256xi1>
    %57 = arith.andi %56, %50 : vector<1x256xi1>
    %58 = vector.broadcast %46 : i32 to vector<1x256xi32>
    %59 = arith.addi %48, %58 : vector<1x256xi32>
    %60 = arith.select %57, %59, %48 : vector<1x256xi1>, vector<1x256xi32>
    %c0_i32_15 = arith.constant 0 : i32
    %61 = vector.broadcast %c0_i32_15 : i32 to vector<1x256xi32>
    %62 = arith.cmpi ne, %60, %61 : vector<1x256xi32>
    %cst_16 = arith.constant 6.250000e-04 : f32
    %cst_17 = arith.constant 0.000000e+00 : f32
    %63 = vector.broadcast %cst_16 : f32 to vector<1x256xf32>
    %64 = vector.broadcast %cst_17 : f32 to vector<1x256xf32>
    %65 = arith.select %62, %63, %64 : vector<1x256xi1>, vector<1x256xf32>
    %66 = vector.extract_strided_slice %65 {offsets = [0, 1], sizes = [1, 255], strides = [1, 1]} : vector<1x256xf32> to vector<1x255xf32>
    %67 = math.absf %44 : vector<2x255xf32>
    %68 = vector.broadcast %66 : vector<1x255xf32> to vector<2x255xf32>
    %69 = arith.mulf %68, %67 : vector<2x255xf32>
    %70 = vector.shape_cast %69 : vector<2x255xf32> to vector<1x2x255xf32>
    %cst_18 = arith.constant dense<0.000000e+00> : vector<1xf32>
    %71 = vector.multi_reduction <add>, %70, %cst_18 [1, 2] : vector<1x2x255xf32> to vector<1xf32>
    %72 = vector.shape_cast %71 : vector<1xf32> to vector<1x1x1xf32>
    %73 = vector.extract %72[0, 0, 0] : f32 from vector<1x1x1xf32>
    %74 = arith.addf %41, %73 : f32
    %75 = vector.extract_strided_slice %0 {offsets = [0, 16], sizes = [2, 240], strides = [1, 1]} : vector<2x256xf32> to vector<2x240xf32>
    %76 = vector.extract_strided_slice %0 {offsets = [0, 0], sizes = [2, 240], strides = [1, 1]} : vector<2x256xf32> to vector<2x240xf32>
    %77 = arith.subf %75, %76 : vector<2x240xf32>
    %78 = math.absf %77 : vector<2x240xf32>
    %79 = vector.shape_cast %78 : vector<2x240xf32> to vector<1x2x240xf32>
    %cst_19 = arith.constant dense<0.000000e+00> : vector<1xf32>
    %80 = vector.multi_reduction <add>, %79, %cst_19 [1, 2] : vector<1x2x240xf32> to vector<1xf32>
    %81 = vector.shape_cast %80 : vector<1xf32> to vector<1x1x1xf32>
    %82 = vector.extract %81[0, 0, 0] : f32 from vector<1x1x1xf32>
    %cst_20 = arith.constant 6.250000e-04 : f32
    %83 = arith.mulf %cst_20, %82 : f32
    %84 = arith.addf %74, %83 : f32
    %85 = vector.broadcast %84 : f32 to vector<1x8x128xf32>
    %c0_21 = arith.constant 0 : index
    %c0_22 = arith.constant 0 : index
    %c0_23 = arith.constant 0 : index
    %86 = vector.load %arg4[%c0_21, %c0_22, %c0_23] : memref<1x8x128xf32, #tpu.memory_space<vmem>>, vector<1x8x128xf32>
    tpu.vector_store %arg4[%c0_21, %c0_22, %c0_23], %85 {strides = array<i32>} : memref<1x8x128xf32, #tpu.memory_space<vmem>>, vector<1x8x128xf32>,
    return
  }
  func.func @transform_0(%arg0: i32) -> (i32, i32) {
    %c0_i32 = arith.constant 0 : i32
    %c0_i32_0 = arith.constant 0 : i32
    return %arg0, %c0_i32 : i32, i32
  }
  func.func @transform_1(%arg0: i32) -> (i32, i32) {
    %c0_i32 = arith.constant 0 : i32
    %c0_i32_0 = arith.constant 0 : i32
    return %arg0, %c0_i32 : i32, i32
  }
  func.func @transform_2(%arg0: i32) -> (i32, i32) {
    %c0_i32 = arith.constant 0 : i32
    %c0_i32_0 = arith.constant 0 : i32
    return %arg0, %c0_i32 : i32, i32
  }
  func.func @transform_3(%arg0: i32) -> (i32, i32, i32) {
    %c0_i32 = arith.constant 0 : i32
    %c0_i32_0 = arith.constant 0 : i32
    %c0_i32_1 = arith.constant 0 : i32
    return %arg0, %c0_i32, %c0_i32_0 : i32, i32, i32
  }
}

</mosaic_0001>

<llo_original>
// kernel: tpu_custom_call.1
$region0: #{tpu_custom_call.1}
  #allocation0 [shape = 'u32[]', space=smem, size = 0x4, offset = 0x4, fixed_abs, tag = 'smem constant byte address 0x4 - core index']
  #allocation1 [shape = 'u32[144,128]{1,0:T(1,128)}', space=vmem, size = 0x12000, scoped, tag = 'internal scratch']
  %s0 = inlined_call_operand.hbm [shape: f32[2,256], index: 0, kind: input, shape index: {}]
  %s1 = inlined_call_operand.hbm [shape: f32[2,256], index: 1, kind: input, shape index: {}]
  %s2 = inlined_call_operand.vmem [shape: s32[2,2], index: 2, kind: input, shape index: {}]
  %s3 = inlined_call_operand.hbm [shape: f32[1,8,128], index: 3, kind: output, shape index: {}]
  %s4 = sld [smem:[#allocation0]]
  $region30: #{tpu_custom_call.1} parent=0
    _
  %s6 = ssub.s32 1, %s4
  %s7 = scalar_select 0, %s6, %s4
  $region1: #{tpu_custom_call.1} parent=0
    #allocation2 [shape = 'u8[2048]{0}', space=vmem, size = 0x800, scoped, tag = 'input window, operand 0, single buffered']
    #allocation3 [shape = 's32[1]{0}', space=sflag, size = 0x4, scoped, tag = 'scoped memory for tpu_custom_call.1']
    #allocation4 [shape = 's32[1]{0}', space=sflag, size = 0x4, scoped, tag = 'scoped memory for tpu_custom_call.1']
    #allocation5 [shape = 'u8[2048]{0}', space=vmem, size = 0x800, scoped, tag = 'input window, operand 1, single buffered']
    #allocation6 [shape = 's32[1]{0}', space=sflag, size = 0x4, scoped, tag = 'scoped memory for tpu_custom_call.1']
    #allocation7 [shape = 'u8[4096]{0}', space=vmem, size = 0x1000, scoped, tag = 'output window, operand 0, single buffered']
    %8 = vsyncpa [#allocation3], 0
    %9 = vsyncpa [#allocation6], 0
    %10 = vsyncpa [#allocation4], 0
    // Predicated region
    $region2: #{tpu_custom_call.1} parent=1 // pred_check
      _
    $region3: #{tpu_custom_call.1} parent=1 // pred_check_branch
      %12 = sbr.rel (0) target = $region5
    $region4: #{tpu_custom_call.1} parent=1 // pred_region
      %s14 = ssub.s32 64, 64
      %15 = vsyncadd [#allocation3], %s14
      %s17 = sshll.u32 [#allocation2], 4
      %s18 = int_to_ptr.vmem [resolvable:$true] %s17
      %20 = dma.hbm_to_vmem [thread:$0]  %s0, 64, %s18, [#allocation3]
    $region5: #{tpu_custom_call.1} parent=1 // pred_fallthru
      _
    // Predicated region
    $region6: #{tpu_custom_call.1} parent=1 // pred_check
      _
    $region7: #{tpu_custom_call.1} parent=1 // pred_check_branch
      %22 = sbr.rel (0) target = $region9
    $region8: #{tpu_custom_call.1} parent=1 // pred_region
      %s24 = ssub.s32 64, 64
      %25 = vsyncadd [#allocation6], %s24
      %s27 = sshll.u32 [#allocation5], 4
      %s28 = int_to_ptr.vmem [resolvable:$true] %s27
      %30 = dma.hbm_to_vmem [thread:$0]  %s1, 64, %s28, [#allocation6]
    $region9: #{tpu_custom_call.1} parent=1 // pred_fallthru
      _
    // Predicated region
    $region10: #{tpu_custom_call.1} parent=1 // pred_check
      _
    $region11: #{tpu_custom_call.1} parent=1 // pred_check_branch
      %32 = sbr.rel (0) target = $region13
    $region12: #{tpu_custom_call.1} parent=1 // pred_region
      _
    $region13: #{tpu_custom_call.1} parent=1 // pred_fallthru
      _
    // Predicated region
    $region14: #{tpu_custom_call.1} parent=1 // pred_check
      _
    $region15: #{tpu_custom_call.1} parent=1 // pred_check_branch
      %34 = sbr.rel (0) target = $region17
    $region16: #{tpu_custom_call.1} parent=1 // pred_region
      %35 = dma.done [#allocation3], 64
    $region17: #{tpu_custom_call.1} parent=1 // pred_fallthru
      _
    // Predicated region
    $region18: #{tpu_custom_call.1} parent=1 // pred_check
      _
    $region19: #{tpu_custom_call.1} parent=1 // pred_check_branch
      %37 = sbr.rel (0) target = $region21
    $region20: #{tpu_custom_call.1} parent=1 // pred_region
      %38 = dma.done [#allocation6], 64
    $region21: #{tpu_custom_call.1} parent=1 // pred_fallthru
      _
    %v39 = vld [vmem:[#allocation2] sm:$0xf]
    %v40 = vld [vmem:[#allocation5] sm:$0xf]
    %v41 = vld [vmem:[%s2] sm:$0x3]
    %v42 = vlog2.pop %v39
    %v43 = vmul.f32 %v42, 0.6931472
    %v44 = vmax.f32 %v43, -100.0
    %v45 = vsub.f32 1.0, %v39
    %v46 = vlog2.pop %v45
    %v47 = vmul.f32 %v46, 0.6931472
    %v48 = vmax.f32 %v47, -100.0
    %v49 = vsub.f32 %v44, %v48
    %v50 = vmul.f32 %v40, %v49
    %v51 = vadd.f32 %v48, %v50
    %v52 = vsub.f32 0.0, %v51
    %v53 = vlaneseq
    %v54 = vand.u32 %v53, 127
    %v55 = vadd.s32 %v54, 128
    %56 = vset.pattern.permute.xlu0 0
    %57 = vperm.xlu0 %56, %v41
    %v58 = vpop.permute.xlu0 %57
    %vm59 = vcmp.eq.s32.totalorder %v54, %v58
    %vm60 = vcmp.eq.s32.totalorder %v55, %v58
    %v61 = vsel %vm59, 1, 0
    %v62 = vsel %vm60, 1, 0
    %v63 = vcvt.s32.f32 %v61
    %v64 = vcvt.s32.f32 %v62
    %65 = vset.pattern.permute.xlu0 1
    %66 = vperm.xlu0 %65, %v41
    %v67 = vpop.permute.xlu0 %66
    %vm68 = vcmp.eq.s32.totalorder %v54, %v67
    %vm69 = vcmp.eq.s32.totalorder %v55, %v67
    %v70 = vsel %vm68, 1, 0
    %v71 = vsel %vm69, 1, 0
    %v72 = vcvt.s32.f32 %v70
    %v73 = vcvt.s32.f32 %v71
    %v74 = vadd.f32 %v63, %v72
    %v75 = vadd.f32 %v64, %v73
    %v76 = vmul.f32 %v52, 0.001953125
    %v77 = vmul.f32 %v74, 0.25
    %v78 = vmul.f32 %v75, 0.25
    %v79 = vsub.f32 0.1, %v77
    %v80 = vsub.f32 0.1, %v78
    %v83 = vcombine.low %v79, %v80
    %v85 = vunpack.c.l.s4 1983009808
    %v86 = vunpack.c.0.s8 %v85
    %v87 = vlaneseq
    %v88 = vshrl.u32 %v87, 7
    %v89 = vsub.s32 %v86, %v88
    %v90 = vrot.slane %v83, %v89
    %v92 = vmul.f32 %v39, %v90
    %v93 = vadd.f32 %v76, %v92
    %v96 = vunpack.c.l.s4 1983009808
    %v97 = vunpack.c.0.s8 %v96
    %v98 = vlaneseq
    %v99 = vshrl.u32 %v98, 7
    %v100 = vsub.s32 %v97, %v99
    %v101 = vrot.slane %v93, %v100
    %v102 = vcombine.high %v101, %v101
    %vm105 = vcmask 1041408
    %v106 = vsel %vm105, %v101, 0.0
    %v107 = vsel %vm105, %v102, 0.0
    %v108 = vadd.f32 %v106, %v107
    %109 = vadd.xlane.f32.xlu0 %v108
    %v110 = vpop.xlane.xlu0 %109
    %v111 = vrot.slane %v110, 4
    %v112 = vadd.f32 %v110, %v111
    %v113 = vrot.slane %v112, 2
    %v114 = vadd.f32 %v112, %v113
    %v115 = vrot.slane %v114, 1
    %v116 = vadd.f32 %v114, %v115
    %s117 = vtos %v116
    %119 = vrot.lane.b32.xlu0 %v39, 1
    %v120 = vpop.permute.xlu0 %119
    %v121 = vrot.slane %v120, 6
    %vm122 = vcmask 7168
    %v123 = vsel %vm122, %v121, %v120
    %v125 = vsub.f32 %v39, %v123
    %vm126 = vcmp.lt.s32.totalorder %v54, 0
    %v127 = vsub.s32 0, %v54
    %v128 = vsel %vm126, %v127, %v54
    %v129 = vshrl.u32 %v128, 4
    %v130 = vand.u32 %v128, 15
    %v131 = vsub.s32 0, %v130
    %v132 = vsel %vm126, %v131, %v130
    %vm133 = vcmp.lt.s32.totalorder %v55, 0
    %v134 = vsub.s32 0, %v55
    %v135 = vsel %vm133, %v134, %v55
    %v136 = vshrl.u32 %v135, 4
    %v137 = vand.u32 %v135, 15
    %v138 = vsub.s32 0, %v137
    %v139 = vsel %vm133, %v138, %v137
    %vm140 = vcmp.ne.s32.totalorder %v132, 0
    %vm141 = vcmp.ne.s32.totalorder %v139, 0
    %vm142 = vcmp.lt.s32.totalorder %v132, 0
    %vm143 = vcmp.lt.s32.totalorder %v139, 0
    %vm144 = vmand %vm142, %vm140
    %vm145 = vmand %vm143, %vm141
    %v146 = vadd.s32 %v132, 16
    %v147 = vadd.s32 %v139, 16
    %v148 = vsel %vm144, %v146, %v132
    %v149 = vsel %vm145, %v147, %v139
    %vm150 = vcmp.ne.s32.totalorder %v148, 0
    %vm151 = vcmp.ne.s32.totalorder %v149, 0
    %v152 = vsel %vm150, 0.000625, 0.0
    %v153 = vsel %vm151, 0.000625, 0.0
    %v154 = vand.u32 2147483647, %v125
    %v157 = vunpack.c.l.s4 1983009808
    %v158 = vunpack.c.0.s8 %v157
    %v159 = vlaneseq
    %v160 = vshrl.u32 %v159, 7
    %v161 = vsub.s32 %v158, %v160
    %v162 = vrot.slane %v154, %v161
    %v163 = vcombine.high %v162, %v162
    %v166 = vmul.f32 %v152, %v162
    %v167 = vmul.f32 %v153, %v163
    %170 = vrot.lane.b32.xlu0 %v166, 127
    %v171 = vpop.permute.xlu0 %170
    %172 = vrot.lane.b32.xlu0 %v167, 127
    %v173 = vpop.permute.xlu0 %172
    %vm174 = vcmask 1039360
    %v175 = vsel %vm174, %v171, %v173
    %v178 = vsel %vm105, %v175, 0.0
    %vm179 = vcmask 1033216
    %v180 = vsel %vm179, %v173, 0.0
    %v181 = vadd.f32 %v178, %v180
    %182 = vadd.xlane.f32.xlu0 %v181
    %v183 = vpop.xlane.xlu0 %182
    %v184 = vrot.slane %v183, 4
    %v185 = vadd.f32 %v183, %v184
    %v186 = vrot.slane %v185, 2
    %v187 = vadd.f32 %v185, %v186
    %v188 = vrot.slane %v187, 1
    %v189 = vadd.f32 %v187, %v188
    %s190 = vtos %v189
    %s191 = sadd.f32 %s117, %s190
    %192 = vrot.lane.b32.xlu0 %v39, 16
    %v193 = vpop.permute.xlu0 %192
    %v194 = vrot.slane %v193, 6
    %vm195 = vcmask 130048
    %v196 = vsel %vm195, %v194, %v193
    %v198 = vsub.f32 %v39, %v196
    %v199 = vand.u32 2147483647, %v198
    %v202 = vunpack.c.l.s4 1983009808
    %v203 = vunpack.c.0.s8 %v202
    %v204 = vlaneseq
    %v205 = vshrl.u32 %v204, 7
    %v206 = vsub.s32 %v203, %v205
    %v207 = vrot.slane %v199, %v206
    %v208 = vcombine.high %v207, %v207
    %209 = vrot.lane.b32.xlu0 %v207, 112
    %v210 = vpop.permute.xlu0 %209
    %211 = vrot.lane.b32.xlu0 %v208, 112
    %v212 = vpop.permute.xlu0 %211
    %vm213 = vcmask 916480
    %v214 = vsel %vm213, %v210, %v212
    %v217 = vsel %vm105, %v214, 0.0
    %vm218 = vcmask 910336
    %v219 = vsel %vm218, %v212, 0.0
    %v220 = vadd.f32 %v217, %v219
    %221 = vadd.xlane.f32.xlu0 %v220
    %v222 = vpop.xlane.xlu0 %221
    %v223 = vrot.slane %v222, 4
    %v224 = vadd.f32 %v222, %v223
    %v225 = vrot.slane %v224, 2
    %v226 = vadd.f32 %v224, %v225
    %v227 = vrot.slane %v226, 1
    %v228 = vadd.f32 %v226, %v227
    %s229 = vtos %v228
    %s230 = smul.f32 %s229, 0.000625
    %s231 = sadd.f32 %s191, %s230
    %v232 = vstv %s231
    %233 = vst [vmem:[#allocation7] sm:$0xff] %v232
    // Predicated region
    $region22: #{tpu_custom_call.1} parent=1 // pred_check
      _
    $region23: #{tpu_custom_call.1} parent=1 // pred_check_branch
      %235 = sbr.rel (0) target = $region25
    $region24: #{tpu_custom_call.1} parent=1 // pred_region
      %s237 = ssub.s32 128, 128
      %238 = vsyncadd [#allocation4], %s237
      %s240 = sshll.u32 [#allocation7], 4
      %s241 = int_to_ptr.vmem [resolvable:$true] %s240
      %243 = dma.vmem_to_hbm [thread:$0]  %s241, 128, %s3, [#allocation4]
    $region25: #{tpu_custom_call.1} parent=1 // pred_fallthru
      _
    // Predicated region
    $region26: #{tpu_custom_call.1} parent=1 // pred_check
      _
    $region27: #{tpu_custom_call.1} parent=1 // pred_check_branch
      %245 = sbr.rel (0) target = $region29
    $region28: #{tpu_custom_call.1} parent=1 // pred_region
      %246 = dma.done [#allocation4], 128
    $region29: #{tpu_custom_call.1} parent=1 // pred_fallthru
      _
    %247 = vsyncpa [#allocation3], 1
    %248 = vsyncpa [#allocation6], 1
    %249 = vsyncpa [#allocation4], 1

</llo_original>
